<compile_context>
chip_gen: v7x
topology: tpu7x:2x2x1
jax: 0.10.0
libtpu: 0.0.40
codegen_flags: <defaults>
</compile_context>

<pallas_src>
import functools

import jax
import jax.numpy as jnp
from jax.experimental import pallas as pl
from jax.experimental.pallas import tpu as pltpu


def _ceil_div(a, b):
    return -(-a // b)


def _round_up(x, m):
    return _ceil_div(x, m) * m


def _fit_tile(dim, max_tile, align):
    """Pick (tile, padded_dim) for one problem dimension.

    If the dim fits in one tile we use the full (possibly unaligned) extent:
    a block dim equal to the full array dim needs no (8,128) alignment and no
    padding. Otherwise pick the smallest aligned tile matching
    ceil(dim / max_tile) blocks, so padding stays bounded instead of nearly
    doubling the extent.
    """
    if dim <= max_tile:
        return dim, dim
    nblk = _ceil_div(dim, max_tile)
    tile = _round_up(_ceil_div(dim, nblk), align)
    return tile, _round_up(dim, tile)


# --------------------------------------------------------------------------
# Kernels
# --------------------------------------------------------------------------
def _fc_single_k_kernel(x_ref, w_ref, b_ref, o_ref, *, compute_dtype):
    # x: (e,tm,tk)  w: (e,tk,tn)  b: (e,1,tn)  o: (e,tm,tn)
    # Whole reduction in one tk tile -> no scratch, no init/finalize phases.
    acc = jnp.einsum(
        "ebi,eio->ebo",
        x_ref[...].astype(compute_dtype),   # cast in VMEM, not in HBM
        w_ref[...].astype(compute_dtype),
        preferred_element_type=jnp.float32)
    o_ref[...] = (acc + b_ref[...].astype(jnp.float32)).astype(o_ref.dtype)


def _fc_multi_k_kernel(x_ref, w_ref, b_ref, o_ref, acc_ref, *, compute_dtype):
    # K is the last ("arbitrary") grid axis; f32 accumulator scratch.
    k = pl.program_id(3)

    @pl.when(k == 0)
    def _init():
        acc_ref[...] = jnp.zeros_like(acc_ref)

    acc_ref[...] += jnp.einsum(
        "ebi,eio->ebo",
        x_ref[...].astype(compute_dtype),
        w_ref[...].astype(compute_dtype),
        preferred_element_type=jnp.float32)

    @pl.when(k == pl.num_programs(3) - 1)
    def _finalize():
        o_ref[...] = (acc_ref[...] + b_ref[...].astype(jnp.float32)
                      ).astype(o_ref.dtype)


# --------------------------------------------------------------------------
# Wrapper
# --------------------------------------------------------------------------
def ensemble_fc(x, weight, bias=None, *, compute_dtype=None,
                e_tile=None, tm_max=256, tn_max=None, tk_max=None):
    """out[e] = x[e] @ weight[e] + bias[e]   (EnsembleFC.forward)."""
    E, B, I = x.shape
    Ew, Iw, O = weight.shape
    assert (Ew, Iw) == (E, I), (weight.shape, x.shape)
    if bias is None:
        bias = jnp.zeros((E, O), x.dtype)
    assert bias.shape == (E, O)
    out_dtype = x.dtype
    cdt = jnp.dtype(compute_dtype) if compute_dtype is not None else jnp.dtype(x.dtype)

    # ---- per-generation VMEM sizing --------------------------------------
    try:
        vmem_cap = int(pltpu.get_tpu_info().vmem_capacity_bytes)
    except Exception:
        vmem_cap = 64 << 20                      # conservative (v7x-sized)
    big_vmem = vmem_cap >= (100 << 20)           # v5e/v6e: 128 MiB; v7x: 64 MiB/TC
    tile_budget = (48 << 20) if big_vmem else (24 << 20)
    vmem_limit_cap = (96 << 20) if big_vmem else (52 << 20)
    if tn_max is None:
        tn_max = 512 if big_vmem else 256
    if tk_max is None:
        tk_max = 1024                            # fewer K steps -> fewer acc RMW passes

    # ---- tile sizes (adaptive; full-extent blocks when small) ------------
    tm, Bp = _fit_tile(B, tm_max, 8)
    tn, Op = _fit_tile(O, tn_max, 128)
    tk, Ip = _fit_tile(I, tk_max, 128)
    k_blocks = Ip // tk
    single_k = (k_blocks == 1)

    x_bytes = jnp.dtype(x.dtype).itemsize
    w_bytes = jnp.dtype(weight.dtype).itemsize
    b_bytes = jnp.dtype(bias.dtype).itemsize
    o_bytes = jnp.dtype(out_dtype).itemsize
    c_bytes = cdt.itemsize
    cast_tmp = 0
    if cdt != jnp.dtype(x.dtype):
        cast_tmp += tm * tk * c_bytes
    if cdt != jnp.dtype(weight.dtype):
        cast_tmp += tk * tn * c_bytes
    per_e_vmem = (
        2 * tm * tk * x_bytes                    # double-buffered x tiles
        + 2 * tk * tn * w_bytes                  # double-buffered w tiles
        + 2 * tm * tn * o_bytes                  # double-buffered out tiles
        + 2 * 8 * tn * 4                         # bias (1-row tile, sublane-padded to 8)
        + tm * tn * 4                            # f32 einsum result temp
        + (0 if single_k else tm * tn * 4)       # f32 accumulator scratch
        + cast_tmp)

    # ---- e_tile: VMEM budget, >=2 parallel blocks, divisor-friendly -------
    nm, nn = Bp // tm, Op // tn
    if e_tile is None:
        cap = max(1, min(E, tile_budget // per_e_vmem))
        if nm * nn < 2 and E >= 2:
            # keep >=2 blocks on the ensemble axis so both v7x TCs get work
            cap = min(cap, _ceil_div(E, 2))
        best_key, best_e = None, 1
        for cand in range(1, cap + 1):
            pad = _round_up(E, cand) - E          # dead padded ensemble members
            blocks = _ceil_div(E, cand)           # serial grid steps on this axis
            key = (pad, blocks)
            if best_key is None or key < best_key:
                best_key, best_e = key, cand
        e_tile = best_e
    e_tile = max(1, min(int(e_tile), E))
    Ep = _round_up(E, e_tile)

    # ---- pad ONLY when needed; never cast in the wrapper ------------------
    x_in = x
    if (Ep, Bp, Ip) != (E, B, I):
        x_in = jnp.pad(x, ((0, Ep - E), (0, Bp - B), (0, Ip - I)))
    w_in = weight
    if (Ep, Ip, Op) != (E, I, O):
        w_in = jnp.pad(weight, ((0, Ep - E), (0, Ip - I), (0, Op - O)))
    b_in = bias
    if (Ep, Op) != (E, O):
        b_in = jnp.pad(bias, ((0, Ep - E), (0, Op - O)))
    # (e_tile, 1, tn) bias tile: second-to-last dim 1 == full dim, so the
    # (8,128) rule is satisfied for any e_tile (a 2-D (e_tile, tn) block would
    # require e_tile % 8 == 0).
    b_in = b_in.reshape(Ep, 1, Op)

    vmem_est = e_tile * per_e_vmem + (2 << 20)   # headroom for Mosaic scratch
    vmem_limit = int(min(max(2 * vmem_est, 32 << 20), vmem_limit_cap))

    cost = pl.CostEstimate(
        flops=2 * Ep * Bp * Ip * Op,
        transcendentals=0,
        bytes_accessed=int(x_in.size * x_bytes + w_in.size * w_bytes
                           + b_in.size * b_bytes + Ep * Bp * Op * o_bytes))

    if single_k:
        kernel = functools.partial(_fc_single_k_kernel, compute_dtype=cdt)
        grid = (Ep // e_tile, nm, nn)
        in_specs = [
            pl.BlockSpec((e_tile, tm, tk), lambda e, m, n: (e, m, 0)),
            pl.BlockSpec((e_tile, tk, tn), lambda e, m, n: (e, 0, n)),
            pl.BlockSpec((e_tile, 1, tn), lambda e, m, n: (e, 0, n)),
        ]
        out_specs = pl.BlockSpec((e_tile, tm, tn), lambda e, m, n: (e, m, n))
        scratch_shapes = []
        dims = ("parallel", "parallel", "parallel")
    else:
        kernel = functools.partial(_fc_multi_k_kernel, compute_dtype=cdt)
        grid = (Ep // e_tile, nm, nn, k_blocks)
        in_specs = [
            pl.BlockSpec((e_tile, tm, tk), lambda e, m, n, k: (e, m, k)),
            pl.BlockSpec((e_tile, tk, tn), lambda e, m, n, k: (e, k, n)),
            pl.BlockSpec((e_tile, 1, tn), lambda e, m, n, k: (e, 0, n)),
        ]
        out_specs = pl.BlockSpec((e_tile, tm, tn), lambda e, m, n, k: (e, m, n))
        scratch_shapes = [pltpu.VMEM((e_tile, tm, tn), jnp.float32)]
        dims = ("parallel", "parallel", "parallel", "arbitrary")

    out_p = pl.pallas_call(
        kernel,
        out_shape=jax.ShapeDtypeStruct((Ep, Bp, Op), out_dtype),
        grid_spec=pltpu.PrefetchScalarGridSpec(
            num_scalar_prefetch=0,
            grid=grid,
            in_specs=in_specs,
            out_specs=out_specs,
            scratch_shapes=scratch_shapes,
        ),
        compiler_params=pltpu.CompilerParams(
            dimension_semantics=dims,
            vmem_limit_bytes=vmem_limit,
        ),
        cost_estimate=cost,
    )(x_in, w_in, b_in)

    if (Ep, Bp, Op) != (E, B, O):
        out_p = out_p[:E, :B, :O]
    return out_p


if __name__ == "__main__":
    key = jax.random.PRNGKey(0)
    kx, kw, kb, k2x, k2w, k2b = jax.random.split(key, 6)

    # ---- Case 1: small EnsembleFC layer (single-K fast path, zero padding).
    E, B, I, O = 4, 8, 32, 16
    x = jax.random.normal(kx, (E, B, I), jnp.float32)
    # reset_parameters() in the module is a no-op -> deterministic synthetic init.
    w = jax.random.normal(kw, (E, I, O), jnp.float32) * 0.05
    b = jax.random.normal(kb, (E, O), jnp.float32) * 0.1
    ref = jnp.einsum("ebi,eio->ebo", x, w) + b[:, None, :]

    out = jax.block_until_ready(ensemble_fc(x, w, b))       # f32-faithful default
    assert out.shape == (E, B, O)
    assert jnp.allclose(out, ref, atol=1e-5, rtol=1e-5)

    out_bf16 = jax.block_until_ready(
        ensemble_fc(x, w, b, compute_dtype=jnp.bfloat16))    # opt-in bf16 MXU path
    assert out_bf16.shape == (E, B, O)
    assert jnp.allclose(out_bf16, ref, atol=2e-2, rtol=2e-2)

    # ---- Case 2: force the multi-K accumulator path (K tiled, axis last).
    E2, B2, I2, O2 = 3, 16, 256, 40
    x2 = jax.random.normal(k2x, (E2, B2, I2), jnp.float32)
    w2 = jax.random.normal(k2w, (E2, I2, O2), jnp.float32) * 0.02
    b2 = jax.random.normal(k2b, (E2, O2), jnp.float32) * 0.1
    ref2 = jnp.einsum("ebi,eio->ebo", x2, w2) + b2[:, None, :]

    out2 = jax.block_until_ready(ensemble_fc(x2, w2, b2, tk_max=128))
    assert out2.shape == (E2, B2, O2)
    assert jnp.allclose(out2, ref2, atol=1e-4, rtol=1e-4)

    print("KERNEL_OK")
</pallas_src>

<mosaic_0001>
module attributes {stable_mosaic.version = 11 : i64} {
  func.func @_fc_single_k_kernel(%arg0: i32, %arg1: i32, %arg2: i32, %arg3: memref<2x8x32xf32, #tpu.memory_space<vmem>>, %arg4: memref<2x32x16xf32, #tpu.memory_space<vmem>>, %arg5: memref<2x1x16xf32, #tpu.memory_space<vmem>>, %arg6: memref<2x8x16xf32, #tpu.memory_space<vmem>>) attributes {dimension_semantics = [#tpu.dimension_semantics<parallel>, #tpu.dimension_semantics<parallel>, #tpu.dimension_semantics<parallel>], iteration_bounds = array<i64: 2, 1, 1>, scalar_prefetch = 0 : i64, scratch_operands = 0 : i64, tpu.core_type = #tpu.core_type<tc>, window_params = [{transform_indices = @transform_0, window_bounds = array<i64: 2, 8, 32>}, {transform_indices = @transform_1, window_bounds = array<i64: 2, 32, 16>}, {transform_indices = @transform_2, window_bounds = array<i64: 2, 1, 16>}, {transform_indices = @transform_3, window_bounds = array<i64: 2, 8, 16>}]} {
    %c0 = arith.constant 0 : index
    %c0_0 = arith.constant 0 : index
    %c0_1 = arith.constant 0 : index
    %0 = vector.load %arg3[%c0, %c0_0, %c0_1] : memref<2x8x32xf32, #tpu.memory_space<vmem>>, vector<2x8x32xf32>
    %c0_2 = arith.constant 0 : index
    %c0_3 = arith.constant 0 : index
    %c0_4 = arith.constant 0 : index
    %1 = vector.load %arg4[%c0_2, %c0_3, %c0_4] : memref<2x32x16xf32, #tpu.memory_space<vmem>>, vector<2x32x16xf32>
    "tpu.trace_start"() <{level = 10 : i32, message = "ebi,eio->ebo"}> : () -> ()
    %cst = arith.constant dense<0.000000e+00> : vector<2x8x16xf32>
    %2 = tpu.matmul %0, %1, %cst {dimension_numbers = #tpu.dot_dimension_numbers<[2], [1], [1], [2], [0, 0, 0, 1, 1, 2], [0], [0]>} : vector<2x8x32xf32>, vector<2x32x16xf32>, vector<2x8x16xf32> -> vector<2x8x16xf32>
    "tpu.trace_stop"() : () -> ()
    %c0_5 = arith.constant 0 : index
    %c0_6 = arith.constant 0 : index
    %c0_7 = arith.constant 0 : index
    %3 = vector.load %arg5[%c0_5, %c0_6, %c0_7] : memref<2x1x16xf32, #tpu.memory_space<vmem>>, vector<2x1x16xf32>
    %4 = vector.broadcast %3 : vector<2x1x16xf32> to vector<2x8x16xf32>
    %5 = arith.addf %2, %4 : vector<2x8x16xf32>
    %c0_8 = arith.constant 0 : index
    %c0_9 = arith.constant 0 : index
    %c0_10 = arith.constant 0 : index
    %6 = vector.load %arg6[%c0_8, %c0_9, %c0_10] : memref<2x8x16xf32, #tpu.memory_space<vmem>>, vector<2x8x16xf32>
    tpu.vector_store %arg6[%c0_8, %c0_9, %c0_10], %5 {strides = array<i32>} : memref<2x8x16xf32, #tpu.memory_space<vmem>>, vector<2x8x16xf32>,
    return
  }
  func.func @transform_0(%arg0: i32, %arg1: i32, %arg2: i32) -> (i32, i32, i32) {
    %c0_i32 = arith.constant 0 : i32
    %c0_i32_0 = arith.constant 0 : i32
    return %arg0, %arg1, %c0_i32 : i32, i32, i32
  }
  func.func @transform_1(%arg0: i32, %arg1: i32, %arg2: i32) -> (i32, i32, i32) {
    %c0_i32 = arith.constant 0 : i32
    %c0_i32_0 = arith.constant 0 : i32
    return %arg0, %c0_i32, %arg2 : i32, i32, i32
  }
  func.func @transform_2(%arg0: i32, %arg1: i32, %arg2: i32) -> (i32, i32, i32) {
    %c0_i32 = arith.constant 0 : i32
    %c0_i32_0 = arith.constant 0 : i32
    return %arg0, %c0_i32, %arg2 : i32, i32, i32
  }
  func.func @transform_3(%arg0: i32, %arg1: i32, %arg2: i32) -> (i32, i32, i32) {
    %c0_i32 = arith.constant 0 : i32
    return %arg0, %arg1, %arg2 : i32, i32, i32
  }
}

</mosaic_0001>

<llo_original>
// kernel: tpu_custom_call.1
$region0: #{tpu_custom_call.1}
  #allocation0 [shape = 'u32[]', space=smem, size = 0x4, offset = 0x4, fixed_abs, tag = 'smem constant byte address 0x4 - core index']
  #allocation1 [shape = 'u32[144,128]{1,0:T(1,128)}', space=vmem, size = 0x12000, scoped, tag = 'internal scratch']
  %s0 = inlined_call_operand.vmem [shape: f32[4,8,32], index: 0, kind: input, shape index: {}]
  %s1 = inlined_call_operand.vmem [shape: f32[4,32,16], index: 1, kind: input, shape index: {}]
  %s2 = inlined_call_operand.vmem [shape: f32[4,1,16], index: 2, kind: input, shape index: {}]
  %s3 = inlined_call_operand.hbm [shape: f32[4,8,16], index: 3, kind: output, shape index: {}]
  %s4 = sld [smem:[#allocation0]]
  $region45: #{tpu_custom_call.1} parent=0
    _
  %s6 = ssub.s32 1, %s4
  %s7 = scalar_select 0, %s6, %s4
  $region1: #{tpu_custom_call.1} parent=0
    #allocation2 [shape = 'u8[16384]{0}', space=vmem, size = 0x4000, scoped, tag = 'output window, operand 0']
    #allocation3 [shape = 's32[2]{0}', space=sflag, size = 0x8, scoped, tag = 'scoped memory for tpu_custom_call.1']
    %8 = vsyncpa [#allocation3], 0
    %s9 = scalar_lea.sflag [#allocation3], 1
    %10 = vsyncpa %s9, 0
    loop: start=0, step=1, limit=4
    $region2: #{tpu_custom_call.1} parent=1 // loop_pre_header
      _
    $region3: #{tpu_custom_call.1} parent=1 // loop_header
      %s12 = sphi 0, %s16
      %p13 = scmp.ge.s32.totalorder %s12, 4
      %s19 = sphi 0, %s38
      %s20 = sphi 0, %s34
      %s21 = sphi 0, %s30
      %s22 = sphi 0, %s19
      %s23 = sphi 0, %s20
      %s24 = sphi 0, %s21
      %s25 = sphi 0, %s22
      %s26 = sphi 0, %s23
      %s27 = sphi 0, %s24
      %s43 = sphi 0, %s45
      %s46 = sphi 0, %s43
      %s47 = sphi 0, %s46
      %s63 = sphi 0, %s47
      %s71 = sphi 0, %s73
      %s74 = sphi 0, %s71
      %s75 = sphi 0, %s74
      %s91 = sphi 0, %s75
      %s99 = sphi 0, %s101
      %s102 = sphi 0, %s99
      %s103 = sphi 0, %s102
      %s119 = sphi 0, %s103
      %s129 = sphi 0, %s131
      %s132 = sphi 0, %s129
      %s133 = sphi 0, %s132
      %s149 = sphi 0, %s133
    $region4: #{tpu_custom_call.1} parent=1 // loop_header_branch
      %15 = sbr.rel (%p13) target = $region8
    $region5: #{tpu_custom_call.1} parent=1 // loop_body
      %s17 = ssub.s32 %s12, 1
      %s18 = ssub.s32 %s12, 2
      %s28 = sadd.s32 1, %s21
      %p29 = scmp.ge.s32.totalorder %s28, 1
      %s30 = scalar_select %p29, 0, %s28
      %s31 = sadd.s32 1, %s20
      %s32 = scalar_select %p29, %s31, %s20
      %p33 = scmp.ge.s32.totalorder %s32, 1
      %s34 = scalar_select %p33, 0, %s32
      %s35 = sadd.s32 1, %s19
      %s36 = scalar_select %p33, %s35, %s19
      %p37 = scmp.ge.s32.totalorder %s36, 2
      %s38 = scalar_select %p37, 0, %s36
      %s39 = ssub.s32 %s19, %s38
      %s40 = ssub.s32 %s20, %s34
      %s41 = sor.u32 %s39, %s40
      %p42 = scmp.eq.s32.totalorder %s41, 0
      %s44 = sadd.s32 %s43, 1
      %s45 = scalar_select %p42, %s43, %s44
      %p48 = pneg %p42
      %p49 = scmp.eq.s32.totalorder %s12, 1
      %p50 = por %p48, %p49
      %p51 = scmp.ne.s32.totalorder %s43, %s46
      %p52 = scmp.eq.s32.totalorder %s12, 0
      %p53 = por %p51, %p52
      %p54 = scmp.ne.s32.totalorder %s43, %s46
      %p55 = scmp.eq.s32.totalorder %s17, 1
      %p56 = por %p54, %p55
      %p57 = scmp.ne.s32.totalorder %s46, %s47
      %p58 = scmp.eq.s32.totalorder %s17, 0
      %p59 = por %p57, %p58
      %p60 = scmp.ne.s32.totalorder %s46, %s47
      %p61 = scmp.eq.s32.totalorder %s18, 1
      %p62 = por %p60, %p61
      %p64 = scmp.ne.s32.totalorder %s47, %s63
      %p65 = scmp.eq.s32.totalorder %s18, 0
      %p66 = por %p64, %p65
      %s67 = ssub.s32 %s19, %s38
      %s68 = ssub.s32 %s21, %s30
      %s69 = sor.u32 %s67, %s68
      %p70 = scmp.eq.s32.totalorder %s69, 0
      %s72 = sadd.s32 %s71, 1
      %s73 = scalar_select %p70, %s71, %s72
      %p76 = pneg %p70
      %p77 = scmp.eq.s32.totalorder %s12, 1
      %p78 = por %p76, %p77
      %p79 = scmp.ne.s32.totalorder %s71, %s74
      %p80 = scmp.eq.s32.totalorder %s12, 0
      %p81 = por %p79, %p80
      %p82 = scmp.ne.s32.totalorder %s71, %s74
      %p83 = scmp.eq.s32.totalorder %s17, 1
      %p84 = por %p82, %p83
      %p85 = scmp.ne.s32.totalorder %s74, %s75
      %p86 = scmp.eq.s32.totalorder %s17, 0
      %p87 = por %p85, %p86
      %p88 = scmp.ne.s32.totalorder %s74, %s75
      %p89 = scmp.eq.s32.totalorder %s18, 1
      %p90 = por %p88, %p89
      %p92 = scmp.ne.s32.totalorder %s75, %s91
      %p93 = scmp.eq.s32.totalorder %s18, 0
      %p94 = por %p92, %p93
      %s95 = ssub.s32 %s19, %s38
      %s96 = ssub.s32 %s21, %s30
      %s97 = sor.u32 %s95, %s96
      %p98 = scmp.eq.s32.totalorder %s97, 0
      %s100 = sadd.s32 %s99, 1
      %s101 = scalar_select %p98, %s99, %s100
      %p104 = pneg %p98
      %p105 = scmp.eq.s32.totalorder %s12, 1
      %p106 = por %p104, %p105
      %p107 = scmp.ne.s32.totalorder %s99, %s102
      %p108 = scmp.eq.s32.totalorder %s12, 0
      %p109 = por %p107, %p108
      %p110 = scmp.ne.s32.totalorder %s99, %s102
      %p111 = scmp.eq.s32.totalorder %s17, 1
      %p112 = por %p110, %p111
      %p113 = scmp.ne.s32.totalorder %s102, %s103
      %p114 = scmp.eq.s32.totalorder %s17, 0
      %p115 = por %p113, %p114
      %p116 = scmp.ne.s32.totalorder %s102, %s103
      %p117 = scmp.eq.s32.totalorder %s18, 1
      %p118 = por %p116, %p117
      %p120 = scmp.ne.s32.totalorder %s103, %s119
      %p121 = scmp.eq.s32.totalorder %s18, 0
      %p122 = por %p120, %p121
      %s123 = ssub.s32 %s19, %s38
      %s124 = ssub.s32 %s20, %s34
      %s125 = sor.u32 %s123, %s124
      %s126 = ssub.s32 %s21, %s30
      %s127 = sor.u32 %s125, %s126
      %p128 = scmp.eq.s32.totalorder %s127, 0
      %s130 = sadd.s32 %s129, 1
      %s131 = scalar_select %p128, %s129, %s130
      %p134 = pneg %p128
      %p135 = scmp.eq.s32.totalorder %s12, 1
      %p136 = por %p134, %p135
      %p137 = scmp.ne.s32.totalorder %s129, %s132
      %p138 = scmp.eq.s32.totalorder %s12, 0
      %p139 = por %p137, %p138
      %p140 = scmp.ne.s32.totalorder %s129, %s132
      %p141 = scmp.eq.s32.totalorder %s17, 1
      %p142 = por %p140, %p141
      %p143 = scmp.ne.s32.totalorder %s132, %s133
      %p144 = scmp.eq.s32.totalorder %s17, 0
      %p145 = por %p143, %p144
      %p146 = scmp.ne.s32.totalorder %s132, %s133
      %p147 = scmp.eq.s32.totalorder %s18, 1
      %p148 = por %p146, %p147
      %p150 = scmp.ne.s32.totalorder %s133, %s149
      %p151 = scmp.eq.s32.totalorder %s18, 0
      %p152 = por %p150, %p151
      %p153 = scmp.le.s32.totalorder 1, %s12
      %p154 = scmp.lt.s32.totalorder %s12, 3
      %p155 = pnand %p153, %p154
      %p156 = pneg %p155
      // Predicated region
      $region9: #{tpu_custom_call.1} parent=5 // pred_check
        _
      $region10: #{tpu_custom_call.1} parent=5 // pred_check_branch
        %158 = sbr.rel (%p155) target = $region12
      $region11: #{tpu_custom_call.1} parent=5 // pred_region
        %s159 = ssub.s32 %s12, 1
      $region12: #{tpu_custom_call.1} parent=5 // pred_fallthru
        _
      %p160 = scmp.lt.s32.totalorder %s12, 2
      // Predicated region
      $region13: #{tpu_custom_call.1} parent=5 // pred_check
        %p161 = pneg %p160
      $region14: #{tpu_custom_call.1} parent=5 // pred_check_branch
        %163 = sbr.rel (%p161) target = $region16
      $region15: #{tpu_custom_call.1} parent=5 // pred_region
        // Predicated region
        $region17: #{tpu_custom_call.1} parent=15 // pred_check
          %p164 = pneg %p53
        $region18: #{tpu_custom_call.1} parent=15 // pred_check_branch
          %166 = sbr.rel (%p164) target = $region20
        $region19: #{tpu_custom_call.1} parent=15 // pred_region
          %s167 = smul.u32 2, %s19
          %p168 = scmp.lt.s32.totalorder %s167, 3
          %s169 = scalar_select %p168, %s167, 3
          %p170 = scmp.lt.s32.totalorder %s20, 0
          %s171 = scalar_select %p170, %s20, 0
          %s172 = sadd.s32 %s171, %s169
          %s173 = smul.addr %s172, 8
          %s174 = scalar_lea.vmem %s0, %s173
          %s175 = smul.u32 2, %s19
        $region20: #{tpu_custom_call.1} parent=15 // pred_fallthru
          _
        // Predicated region
        $region21: #{tpu_custom_call.1} parent=15 // pred_check
          %p176 = pneg %p81
        $region22: #{tpu_custom_call.1} parent=15 // pred_check_branch
          %178 = sbr.rel (%p176) target = $region24
        $region23: #{tpu_custom_call.1} parent=15 // pred_region
          %s179 = smul.u32 2, %s19
          %p180 = scmp.lt.s32.totalorder %s179, 3
          %s181 = scalar_select %p180, %s179, 3
          %p182 = scmp.lt.s32.totalorder %s21, 0
          %s183 = scalar_select %p182, %s21, 0
          %s184 = smul.addr %s181, 4
          %s185 = sadd.s32 %s183, %s184
          %s186 = smul.addr %s185, 8
          %s187 = scalar_lea.vmem %s1, %s186
          %s188 = smul.u32 2, %s19
        $region24: #{tpu_custom_call.1} parent=15 // pred_fallthru
          _
        // Predicated region
        $region25: #{tpu_custom_call.1} parent=15 // pred_check
          %p189 = pneg %p109
        $region26: #{tpu_custom_call.1} parent=15 // pred_check_branch
          %191 = sbr.rel (%p189) target = $region28
        $region27: #{tpu_custom_call.1} parent=15 // pred_region
          %s192 = smul.u32 2, %s19
          %p193 = scmp.lt.s32.totalorder %s192, 3
          %s194 = scalar_select %p193, %s192, 3
          %p195 = scmp.lt.s32.totalorder %s21, 0
          %s196 = scalar_select %p195, %s21, 0
          %s197 = sadd.s32 %s196, %s194
          %s198 = scalar_lea.vmem %s2, %s197
          %s199 = smul.u32 2, %s19
        $region28: #{tpu_custom_call.1} parent=15 // pred_fallthru
          _
      $region16: #{tpu_custom_call.1} parent=5 // pred_fallthru
        _
      %p200 = scmp.le.s32.totalorder 1, %s12
      %p201 = scmp.lt.s32.totalorder %s12, 3
      %p202 = pnand %p200, %p201
      %p203 = pneg %p202
      // Predicated region
      $region29: #{tpu_custom_call.1} parent=5 // pred_check
        _
      $region30: #{tpu_custom_call.1} parent=5 // pred_check_branch
        %205 = sbr.rel (%p202) target = $region32
      $region31: #{tpu_custom_call.1} parent=5 // pred_region
        %s206 = ssub.s32 %s12, 1
        %s207 = smul.u32 2, %s22
        %p208 = scmp.lt.s32.totalorder %s207, 3
        %s209 = scalar_select %p208, %s207, 3
        %p210 = scmp.lt.s32.totalorder %s23, 0
        %s211 = scalar_select %p210, %s23, 0
        %s212 = sadd.s32 %s211, %s209
        %s213 = smul.addr %s212, 8
        %s214 = scalar_lea.vmem %s0, %s213
        %p215 = pneg %p59
        %p216 = pneg %p56
        %s217 = smul.u32 2, %s22
        %p218 = scmp.lt.s32.totalorder %s217, 3
        %s219 = scalar_select %p218, %s217, 3
        %p220 = scmp.lt.s32.totalorder %s24, 0
        %s221 = scalar_select %p220, %s24, 0
        %s222 = smul.addr %s219, 4
        %s223 = sadd.s32 %s221, %s222
        %s224 = smul.addr %s223, 8
        %s225 = scalar_lea.vmem %s1, %s224
        %p226 = pneg %p87
        %p227 = pneg %p84
        %s228 = smul.u32 2, %s22
        %p229 = scmp.lt.s32.totalorder %s228, 3
        %s230 = scalar_select %p229, %s228, 3
        %p231 = scmp.lt.s32.totalorder %s24, 0
        %s232 = scalar_select %p231, %s24, 0
        %s233 = sadd.s32 %s232, %s230
        %s234 = scalar_lea.vmem %s2, %s233
        %p235 = pneg %p115
        %p236 = pneg %p112
        %p237 = pneg %p145
        %p238 = pneg %p142
        %s239 = sand.u32 %s132, 1
        %s240 = scalar_lea.sflag [#allocation3], %s239
        %s241 = sand.u32 %s132, 1
        %s242 = smul.addr %s241, 16
        %s243 = scalar_lea.vmem [#allocation2], %s242
        %s244 = smul.u32 2, %s22
        %p245 = scmp.lt.s32.totalorder %s244, 3
        %s246 = scalar_select %p245, %s244, 3
        %p247 = scmp.lt.s32.totalorder %s23, 0
        %s248 = scalar_select %p247, %s23, 0
        %s249 = sadd.s32 %s248, %s246
        %s250 = smul.addr %s249, 8
        %s251 = scalar_lea.vmem %s0, %s250
        %s252 = smul.u32 2, %s22
        %s253 = smul.u32 2, %s22
        %p254 = scmp.lt.s32.totalorder %s253, 3
        %s255 = scalar_select %p254, %s253, 3
        %p256 = scmp.lt.s32.totalorder %s24, 0
        %s257 = scalar_select %p256, %s24, 0
        %s258 = smul.addr %s255, 4
        %s259 = sadd.s32 %s257, %s258
        %s260 = smul.addr %s259, 8
        %s261 = scalar_lea.vmem %s1, %s260
        %s262 = smul.u32 2, %s22
        %s263 = smul.u32 2, %s22
        %p264 = scmp.lt.s32.totalorder %s263, 3
        %s265 = scalar_select %p264, %s263, 3
        %p266 = scmp.lt.s32.totalorder %s24, 0
        %s267 = scalar_select %p266, %s24, 0
        %s268 = sadd.s32 %s267, %s265
        %s269 = scalar_lea.vmem %s2, %s268
        %s270 = smul.u32 2, %s22
        %s271 = smul.u32 2, %s22
        %v272 = vld [vmem:[%s251] sm:$0xff]
        %v273 = vld [vmem:[%s251 + $0x8] sm:$0xff]
        %v274 = vld [vmem:[%s261] sm:$0xff]
        %v275 = vld [vmem:[%s261 + $0x8] sm:$0xff]
        %v276 = vld [vmem:[%s261 + $0x10] sm:$0xff]
        %v277 = vld [vmem:[%s261 + $0x18] sm:$0xff]
        %v278 = vld [vmem:[%s261 + $0x20] sm:$0xff]
        %v279 = vld [vmem:[%s261 + $0x28] sm:$0xff]
        %v280 = vld [vmem:[%s261 + $0x30] sm:$0xff]
        %v281 = vld [vmem:[%s261 + $0x38] sm:$0xff]
        %v282 = vld [vmem:[%s269] sm:$0x1]
        %v283 = vld [vmem:[%s269 + $0x1] sm:$0x1]
        %v286 = vlaneseq
        %v287 = vshrl.u32 %v286, 7
        %v288 = vsub.s32 0, %v287
        %v289 = vrot.slane %v282, %v288
        %v290 = vlaneseq
        %v291 = vshrl.u32 %v290, 7
        %v292 = vsub.s32 0, %v291
        %v293 = vrot.slane %v283, %v292
        %vm296 = vcmask 261120
        %v298 = vsel %vm296, %v272, 0
        %300 = vmatprep.subr.mxu0 0.0
        %301 = vmatpush1.msra.mxu0 %v274
        %302 = vmatprep.subr.mxu0 0.0
        %303 = vmatpush1.msra.mxu0 %v275
        %304 = vmatprep.subr.mxu0 0.0
        %305 = vmatpush1.msra.mxu0 %v276
        %306 = vmatprep.subr.mxu0 0.0
        %307 = vmatpush1.msra.mxu0 %v277
        %308 = vmatprep.subr.mxu0 0.0
        %309 = vmatpush1.msra.mxu0 0.0
        %310 = vmatprep.subr.mxu0 0.0
        %311 = vmatpush1.msra.mxu0 0.0
        %312 = vmatprep.subr.mxu0 0.0
        %313 = vmatpush1.msra.mxu0 0.0
        %314 = vmatprep.subr.mxu0 0.0
        %315 = vmatpush1.msra.mxu0 0.0
        %316 = vmatprep.subr.mxu0 0.0
        %317 = vmatpush1.msra.mxu0 0.0
        %318 = vmatprep.subr.mxu0 0.0
        %319 = vmatpush1.msra.mxu0 0.0
        %320 = vmatprep.subr.mxu0 0.0
        %321 = vmatpush1.msra.mxu0 0.0
        %322 = vmatprep.subr.mxu0 0.0
        %323 = vmatpush1.msra.mxu0 0.0
        %324 = vmatprep.subr.mxu0 0.0
        %325 = vmatpush1.msra.mxu0 0.0
        %326 = vmatprep.subr.mxu0 0.0
        %327 = vmatpush1.msra.mxu0 0.0
        %328 = vmatprep.subr.mxu0 0.0
        %329 = vmatpush1.msra.mxu0 0.0
        %330 = vmatprep.subr.mxu0 0.0
        %331 = vmatpush1.msra.mxu0 0.0
        %332 = vmatprep.subr.mxu0 0.0
        %333 = vmatpush1.msra.mxu0 0.0
        %334 = vmatprep.subr.mxu0 0.0
        %335 = vmatpush1.msra.mxu0 0.0
        %336 = vmatprep.subr.mxu0 0.0
        %337 = vmatpush1.msra.mxu0 0.0
        %338 = vmatprep.subr.mxu0 0.0
        %339 = vmatpush1.msra.mxu0 0.0
        %340 = vmatprep.subr.mxu0 0.0
        %341 = vmatpush1.msra.mxu0 0.0
        %342 = vmatprep.subr.mxu0 0.0
        %343 = vmatpush1.msra.mxu0 0.0
        %344 = vmatprep.subr.mxu0 0.0
        %345 = vmatpush1.msra.mxu0 0.0
        %346 = vmatprep.subr.mxu0 0.0
        %347 = vmatpush1.msra.mxu0 0.0
        %348 = vmatprep.subr.mxu0 0.0
        %349 = vmatpush1.msra.mxu0 0.0
        %350 = vmatprep.subr.mxu0 0.0
        %351 = vmatpush1.msra.mxu0 0.0
        %352 = vmatprep.subr.mxu0 0.0
        %353 = vmatpush1.msra.mxu0 0.0
        %354 = vmatprep.subr.mxu0 0.0
        %355 = vmatpush1.msra.mxu0 0.0
        %356 = vmatprep.subr.mxu0 0.0
        %357 = vmatpush1.msra.mxu0 0.0
        %358 = vmatprep.subr.mxu0 0.0
        %359 = vmatpush1.msra.mxu0 0.0
        %360 = vmatprep.subr.mxu0 0.0
        %361 = vmatpush1.msra.mxu0 0.0
        %362 = vmatprep.subr.mxu0 0.0
        %363 = vmatpush1.msra.mxu0 0.0
        %364 = vmatprep.mubr.f32.mxu0 0.0
        %365 = vmatmul.mubr.f32.gmra.mrb[0].mxu0 %v298
        %v366 = vpop.f32.mrb[0].mxu0
        %v367 = vadd.f32 %v289, %v366
        %v368 = vpop.f32.mrb[0].mxu0
        %369 = vdwg.mxu0
        %v371 = vsel %vm296, %v273, 0
        %373 = vmatprep.subr.mxu0 0.0
        %374 = vmatpush1.msra.mxu0 %v278
        %375 = vmatprep.subr.mxu0 0.0
        %376 = vmatpush1.msra.mxu0 %v279
        %377 = vmatprep.subr.mxu0 0.0
        %378 = vmatpush1.msra.mxu0 %v280
        %379 = vmatprep.subr.mxu0 0.0
        %380 = vmatpush1.msra.mxu0 %v281
        %381 = vmatprep.subr.mxu0 0.0
        %382 = vmatpush1.msra.mxu0 0.0
        %383 = vmatprep.subr.mxu0 0.0
        %384 = vmatpush1.msra.mxu0 0.0
        %385 = vmatprep.subr.mxu0 0.0
        %386 = vmatpush1.msra.mxu0 0.0
        %387 = vmatprep.subr.mxu0 0.0
        %388 = vmatpush1.msra.mxu0 0.0
        %389 = vmatprep.subr.mxu0 0.0
        %390 = vmatpush1.msra.mxu0 0.0
        %391 = vmatprep.subr.mxu0 0.0
        %392 = vmatpush1.msra.mxu0 0.0
        %393 = vmatprep.subr.mxu0 0.0
        %394 = vmatpush1.msra.mxu0 0.0
        %395 = vmatprep.subr.mxu0 0.0
        %396 = vmatpush1.msra.mxu0 0.0
        %397 = vmatprep.subr.mxu0 0.0
        %398 = vmatpush1.msra.mxu0 0.0
        %399 = vmatprep.subr.mxu0 0.0
        %400 = vmatpush1.msra.mxu0 0.0
        %401 = vmatprep.subr.mxu0 0.0
        %402 = vmatpush1.msra.mxu0 0.0
        %403 = vmatprep.subr.mxu0 0.0
        %404 = vmatpush1.msra.mxu0 0.0
        %405 = vmatprep.subr.mxu0 0.0
        %406 = vmatpush1.msra.mxu0 0.0
        %407 = vmatprep.subr.mxu0 0.0
        %408 = vmatpush1.msra.mxu0 0.0
        %409 = vmatprep.subr.mxu0 0.0
        %410 = vmatpush1.msra.mxu0 0.0
        %411 = vmatprep.subr.mxu0 0.0
        %412 = vmatpush1.msra.mxu0 0.0
        %413 = vmatprep.subr.mxu0 0.0
        %414 = vmatpush1.msra.mxu0 0.0
        %415 = vmatprep.subr.mxu0 0.0
        %416 = vmatpush1.msra.mxu0 0.0
        %417 = vmatprep.subr.mxu0 0.0
        %418 = vmatpush1.msra.mxu0 0.0
        %419 = vmatprep.subr.mxu0 0.0
        %420 = vmatpush1.msra.mxu0 0.0
        %421 = vmatprep.subr.mxu0 0.0
        %422 = vmatpush1.msra.mxu0 0.0
        %423 = vmatprep.subr.mxu0 0.0
        %424 = vmatpush1.msra.mxu0 0.0
        %425 = vmatprep.subr.mxu0 0.0
        %426 = vmatpush1.msra.mxu0 0.0
        %427 = vmatprep.subr.mxu0 0.0
        %428 = vmatpush1.msra.mxu0 0.0
        %429 = vmatprep.subr.mxu0 0.0
        %430 = vmatpush1.msra.mxu0 0.0
        %431 = vmatprep.subr.mxu0 0.0
        %432 = vmatpush1.msra.mxu0 0.0
        %433 = vmatprep.subr.mxu0 0.0
        %434 = vmatpush1.msra.mxu0 0.0
        %435 = vmatprep.subr.mxu0 0.0
        %436 = vmatpush1.msra.mxu0 0.0
        %437 = vmatprep.mubr.f32.mxu0 0.0
        %438 = vmatmul.mubr.f32.gmra.mrb[0].mxu0 %v371
        %v439 = vpop.f32.mrb[0].mxu0
        %v440 = vadd.f32 %v293, %v439
        %v441 = vpop.f32.mrb[0].mxu0
        %442 = vdwg.mxu0
        %vm443 = vcmask 130048
        %444 = vst.msk [vmem:[%s243] sm:$0xff] %vm443, %v367
        %445 = vst.msk [vmem:[%s243 + $0x8] sm:$0xff] %vm443, %v440
        %s446 = sand.u32 %s132, 1
        %s447 = scalar_lea.sflag [#allocation3], %s446
        %s448 = sand.u32 %s132, 1
        %s449 = smul.addr %s448, 16
        %s450 = scalar_lea.vmem [#allocation2], %s449
        // Predicated region
        $region33: #{tpu_custom_call.1} parent=31 // pred_check
          %p451 = pneg %p142
        $region34: #{tpu_custom_call.1} parent=31 // pred_check_branch
          %453 = sbr.rel (%p451) target = $region36
        $region35: #{tpu_custom_call.1} parent=31 // pred_region
          %s454 = smul.u32 2, %s22
          %s456 = ssub.s32 256, 256
          %457 = vsyncadd %s447, %s456
          %s458 = sadd.s32 %s24, %s23
          %s459 = sadd.s32 %s458, %s454
          %s460 = smul.addr %s459, 128
          %s461 = scalar_lea.hbm %s3, %s460
          %s462 = sshll.u32 %s450, 4
          %s463 = int_to_ptr.vmem [resolvable:$true] %s462
          %468 = dma.vmem_to_hbm [thread:$0]  %s463, 256, %s461, %s447, 128, 128, 8
        $region36: #{tpu_custom_call.1} parent=31 // pred_fallthru
          _
      $region32: #{tpu_custom_call.1} parent=5 // pred_fallthru
        _
      %p469 = scmp.le.s32.totalorder 2, %s12
      // Predicated region
      $region37: #{tpu_custom_call.1} parent=5 // pred_check
        %p470 = pneg %p469
      $region38: #{tpu_custom_call.1} parent=5 // pred_check_branch
        %472 = sbr.rel (%p470) target = $region40
      $region39: #{tpu_custom_call.1} parent=5 // pred_region
        %s473 = ssub.s32 %s12, 2
        // Predicated region
        $region41: #{tpu_custom_call.1} parent=39 // pred_check
          %p474 = pneg %p148
        $region42: #{tpu_custom_call.1} parent=39 // pred_check_branch
          %476 = sbr.rel (%p474) target = $region44
        $region43: #{tpu_custom_call.1} parent=39 // pred_region
          %s477 = sand.u32 %s133, 1
          %s478 = scalar_lea.sflag [#allocation3], %s477
          %s479 = sand.u32 %s133, 1
          %s480 = smul.addr %s479, 16
          %s481 = scalar_lea.vmem [#allocation2], %s480
          %482 = dma.done %s478, 256
        $region44: #{tpu_custom_call.1} parent=39 // pred_fallthru
          _
      $region40: #{tpu_custom_call.1} parent=5 // pred_fallthru
        _
    $region6: #{tpu_custom_call.1} parent=1 // loop_footer
      %s16 = sadd.s32 1, %s12
    $region7: #{tpu_custom_call.1} parent=1 // loop_footer_branch
      %11 = sbr.rel target = $region3
    $region8: #{tpu_custom_call.1} parent=1 // loop_exit
      _
    %483 = vsyncpa [#allocation3], 1
    %s484 = scalar_lea.sflag [#allocation3], 1
    %485 = vsyncpa %s484, 1

</llo_original>
